<compile_context>
chip_gen: v5e
topology: v5e:2x2
jax: 0.10.0
libtpu: 0.0.40
codegen_flags: <defaults>
</compile_context>

<pallas_src>
import functools

import jax
import jax.numpy as jnp
from jax.experimental import pallas as pl
from jax.experimental.pallas import tpu as pltpu


def _round_up(x, m):
    return ((x + m - 1) // m) * m


# --------------------------------------------------------------------------
# Pallas kernel: all L highway layers fused, one row tile per grid step
# --------------------------------------------------------------------------
def _highway_fused_kernel(x_ref, w_ref, b_ref, o_ref, *, num_layers, units):
    # Resident row tile; gate/residual math in f32 on all generations.
    x = x_ref[...].astype(jnp.float32)                      # (tm, Cp)
    for l in range(num_layers):                             # static unroll (L small)
        # One MXU matmul per layer: bf16 inputs, f32 accumulation.
        y = jnp.dot(x.astype(w_ref.dtype), w_ref[l],
                    preferred_element_type=jnp.float32) + b_ref[l]   # (tm, 2Cp)
        h = jnp.maximum(y[:, :units], 0.0)                  # fc1 path  (VPU)
        g = jax.nn.sigmoid(y[:, units:])                    # gate path (EUP)
        x = x + g * (h - x)                                 # == h*g + x*(1-g)
    o_ref[...] = x.astype(o_ref.dtype)


# --------------------------------------------------------------------------
# One-time parameter fusion (hoisted out of the per-forward path)
# --------------------------------------------------------------------------
def fuse_highway_params(w_lin, b_lin, w_gate, b_gate, *, mxu_dtype=jnp.bfloat16):
    """Precompute the fused per-layer [fc1 | gate] operands.

    w_lin / w_gate: (L, C, C) PyTorch nn.Linear weights (out_features, in_features)
    b_lin / b_gate: (L, C)

    Returns
      w_cat: (L, Cp, 2*Cp) mxu_dtype  with Cp = C rounded up to a 128-lane multiple
      b_cat: (L, 1, 2*Cp)  float32
    """
    L, C, _ = w_lin.shape
    Cp = _round_up(C, 128)       # keep the fc1/gate split on a lane-tile boundary

    def prep_w(w):               # torch (out, in) -> (in, out), zero-pad to (Cp, Cp)
        w = jnp.transpose(w, (0, 2, 1))
        return jnp.pad(w, ((0, 0), (0, Cp - C), (0, Cp - C)))

    def prep_b(b):
        return jnp.pad(b, ((0, 0), (0, Cp - C)))

    w_cat = jnp.concatenate([prep_w(w_lin), prep_w(w_gate)], axis=-1)       # (L, Cp, 2Cp)
    b_cat = jnp.concatenate([prep_b(b_lin), prep_b(b_gate)], axis=-1)       # (L, 2Cp)
    return (w_cat.astype(mxu_dtype),
            b_cat.reshape(L, 1, 2 * Cp).astype(jnp.float32))


# --------------------------------------------------------------------------
# Forward wrapper
# --------------------------------------------------------------------------
def highwaynet_forward(x, w_cat, b_cat, *, tm=512):
    """Highwaynet.forward with pre-fused parameters (see fuse_highway_params).

    x: (..., C) input, any number of leading dims, any float dtype.
    """
    orig_shape = x.shape
    C = orig_shape[-1]
    L, Cp, two_cp = w_cat.shape
    assert two_cp == 2 * Cp and Cp >= C, (w_cat.shape, C)

    rows = x.reshape(-1, C)                       # no dtype cast: native dtype in
    M = rows.shape[0]

    # Row tile: multiple of 8 (sublane), and capped so there are always >= 2
    # grid steps (megacore sharding of the "parallel" row axis on v7x).
    tm_eff = min(tm, max(8, _round_up(pl.cdiv(M, 2), 8)))
    m_pad = _round_up(M, tm_eff)
    if (m_pad != M) or (Cp != C):
        rows = jnp.pad(rows, ((0, m_pad - M), (0, Cp - C)))

    itemsize = jnp.dtype(x.dtype).itemsize
    cost = pl.CostEstimate(
        flops=2 * m_pad * L * Cp * (2 * Cp),
        transcendentals=m_pad * L * Cp,                       # sigmoid
        bytes_accessed=(2 * m_pad * Cp * itemsize             # rows in + out
                        + w_cat.size * jnp.dtype(w_cat.dtype).itemsize
                        + b_cat.size * jnp.dtype(b_cat.dtype).itemsize),
    )

    out = pl.pallas_call(
        functools.partial(_highway_fused_kernel, num_layers=L, units=Cp),
        out_shape=jax.ShapeDtypeStruct((m_pad, Cp), x.dtype),
        grid=(m_pad // tm_eff,),
        in_specs=[
            pl.BlockSpec((tm_eff, Cp), lambda i: (i, 0)),        # streamed row tile
            pl.BlockSpec((L, Cp, 2 * Cp), lambda i: (0, 0, 0)),  # resident weights
            pl.BlockSpec((L, 1, 2 * Cp), lambda i: (0, 0, 0)),   # resident biases
        ],
        out_specs=pl.BlockSpec((tm_eff, Cp), lambda i: (i, 0)),  # lane-dense stores
        compiler_params=pltpu.CompilerParams(
            dimension_semantics=("parallel",)),
        cost_estimate=cost,
    )(rows, w_cat, b_cat)

    return out[:M, :C].reshape(orig_shape)


# --------------------------------------------------------------------------
# Pure-JAX reference (mirrors the PyTorch module; optional bf16 matmul path)
# --------------------------------------------------------------------------
def highwaynet_reference(x, w_lin, b_lin, w_gate, b_gate,
                         matmul_dtype=jnp.float32):
    out = x.astype(jnp.float32)
    for l in range(w_lin.shape[0]):
        a = out.astype(matmul_dtype)
        h = jax.nn.relu(
            jnp.dot(a, w_lin[l].T.astype(matmul_dtype),
                    preferred_element_type=jnp.float32) + b_lin[l])
        g = jax.nn.sigmoid(
            jnp.dot(a, w_gate[l].T.astype(matmul_dtype),
                    preferred_element_type=jnp.float32) + b_gate[l])
        out = h * g + out * (1.0 - g)
    return out


# --------------------------------------------------------------------------
# Deterministic synthetic parameters (xavier-ish scale) and smoke test
# --------------------------------------------------------------------------
def init_params(key, num_units, num_layers):
    keys = jax.random.split(key, 4)
    scale = (6.0 / (2.0 * num_units)) ** 0.5          # xavier_uniform-ish magnitude
    w_lin = scale * jax.random.normal(keys[0], (num_layers, num_units, num_units), jnp.float32)
    b_lin = 0.01 * jax.random.normal(keys[1], (num_layers, num_units), jnp.float32)
    w_gate = scale * jax.random.normal(keys[2], (num_layers, num_units, num_units), jnp.float32)
    b_gate = 0.01 * jax.random.normal(keys[3], (num_layers, num_units), jnp.float32)
    return w_lin, b_lin, w_gate, b_gate


if __name__ == "__main__":
    key = jax.random.PRNGKey(0)
    pkey, xkey = jax.random.split(key)

    batch, seq, num_units, num_layers = 2, 16, 128, 4
    w_lin, b_lin, w_gate, b_gate = init_params(pkey, num_units, num_layers)
    x = jax.random.normal(xkey, (batch, seq, num_units), jnp.float32)

    # Fuse parameters ONCE (not inside the per-forward jit).
    w_cat, b_cat = fuse_highway_params(w_lin, b_lin, w_gate, b_gate)
    w_cat, b_cat = jax.device_put(w_cat), jax.device_put(b_cat)

    fwd = jax.jit(highwaynet_forward)
    out = fwd(x, w_cat, b_cat)
    jax.block_until_ready(out)

    assert out.shape == (batch, seq, num_units), out.shape
    out_f32 = out.astype(jnp.float32)

    # Tight structural check against a reference using the same bf16-MXU /
    # f32-accumulate numerics as the kernel.
    ref_bf16 = highwaynet_reference(x, w_lin, b_lin, w_gate, b_gate,
                                    matmul_dtype=jnp.bfloat16)
    assert jnp.allclose(out_f32, ref_bf16, atol=5e-3, rtol=5e-3), \
        float(jnp.max(jnp.abs(out_f32 - ref_bf16)))

    # Loose sanity check against the exact f32 PyTorch-faithful reference
    # (quantization of the matmul inputs to bf16 is the only difference).
    ref_f32 = highwaynet_reference(x, w_lin, b_lin, w_gate, b_gate)
    assert jnp.allclose(out_f32, ref_f32, atol=1e-1, rtol=1e-1), \
        float(jnp.max(jnp.abs(out_f32 - ref_f32)))

    print("KERNEL_OK")
</pallas_src>

<mosaic_0001>
module attributes {stable_mosaic.version = 11 : i64} {
  func.func @_highway_fused_kernel(%arg0: i32, %arg1: memref<16x128xf32, #tpu.memory_space<vmem>>, %arg2: memref<4x128x256xbf16, #tpu.memory_space<vmem>>, %arg3: memref<4x1x256xf32, #tpu.memory_space<vmem>>, %arg4: memref<16x128xf32, #tpu.memory_space<vmem>>) attributes {dimension_semantics = [#tpu.dimension_semantics<parallel>], iteration_bounds = array<i64: 2>, scalar_prefetch = 0 : i64, scratch_operands = 0 : i64, tpu.core_type = #tpu.core_type<tc>, window_params = [{transform_indices = @transform_0, window_bounds = array<i64: 16, 128>}, {pipeline_mode = #tpu.pipeline_mode<synchronous>, transform_indices = @transform_1, window_bounds = array<i64: 4, 128, 256>}, {pipeline_mode = #tpu.pipeline_mode<synchronous>, transform_indices = @transform_2, window_bounds = array<i64: 4, 1, 256>}, {transform_indices = @transform_3, window_bounds = array<i64: 16, 128>}]} {
    %c0 = arith.constant 0 : index
    %c0_0 = arith.constant 0 : index
    %0 = vector.load %arg1[%c0, %c0_0] : memref<16x128xf32, #tpu.memory_space<vmem>>, vector<16x128xf32>
    %1 = arith.truncf %0 : vector<16x128xf32> to vector<16x128xbf16>
    %c0_1 = arith.constant 0 : index
    %c0_2 = arith.constant 0 : index
    %c0_3 = arith.constant 0 : index
    %2 = vector.load %arg2[%c0_1, %c0_2, %c0_3] : memref<4x128x256xbf16, #tpu.memory_space<vmem>>, vector<1x128x256xbf16>
    %3 = vector.shape_cast %2 : vector<1x128x256xbf16> to vector<128x256xbf16>
    %cst = arith.constant dense<0.000000e+00> : vector<16x256xf32>
    %4 = tpu.matmul %1, %3, %cst {dimension_numbers = #tpu.dot_dimension_numbers<[1], [0], [0], [1], [0, 0, 1, 1], [], []>} : vector<16x128xbf16>, vector<128x256xbf16>, vector<16x256xf32> -> vector<16x256xf32>
    %c0_4 = arith.constant 0 : index
    %c0_5 = arith.constant 0 : index
    %c0_6 = arith.constant 0 : index
    %5 = vector.load %arg3[%c0_4, %c0_5, %c0_6] : memref<4x1x256xf32, #tpu.memory_space<vmem>>, vector<1x1x256xf32>
    %6 = vector.shape_cast %5 : vector<1x1x256xf32> to vector<1x256xf32>
    %7 = vector.broadcast %6 : vector<1x256xf32> to vector<16x256xf32>
    %8 = arith.addf %4, %7 : vector<16x256xf32>
    %9 = vector.extract_strided_slice %8 {offsets = [0, 0], sizes = [16, 128], strides = [1, 1]} : vector<16x256xf32> to vector<16x128xf32>
    %cst_7 = arith.constant 0.000000e+00 : f32
    %10 = vector.broadcast %cst_7 : f32 to vector<16x128xf32>
    %11 = arith.maximumf %9, %10 : vector<16x128xf32>
    %12 = vector.extract_strided_slice %8 {offsets = [0, 128], sizes = [16, 128], strides = [1, 1]} : vector<16x256xf32> to vector<16x128xf32>
    %13 = arith.negf %12 : vector<16x128xf32>
    %14 = math.exp %13 : vector<16x128xf32>
    %cst_8 = arith.constant 1.000000e+00 : f32
    %15 = vector.broadcast %cst_8 : f32 to vector<16x128xf32>
    %16 = arith.addf %15, %14 : vector<16x128xf32>
    %17 = arith.divf %15, %16 : vector<16x128xf32>
    %18 = arith.subf %11, %0 : vector<16x128xf32>
    %19 = arith.mulf %17, %18 : vector<16x128xf32>
    %20 = arith.addf %0, %19 : vector<16x128xf32>
    %21 = arith.truncf %20 : vector<16x128xf32> to vector<16x128xbf16>
    %c1 = arith.constant 1 : index
    %c0_9 = arith.constant 0 : index
    %c0_10 = arith.constant 0 : index
    %22 = vector.load %arg2[%c1, %c0_9, %c0_10] : memref<4x128x256xbf16, #tpu.memory_space<vmem>>, vector<1x128x256xbf16>
    %23 = vector.shape_cast %22 : vector<1x128x256xbf16> to vector<128x256xbf16>
    %cst_11 = arith.constant dense<0.000000e+00> : vector<16x256xf32>
    %24 = tpu.matmul %21, %23, %cst_11 {dimension_numbers = #tpu.dot_dimension_numbers<[1], [0], [0], [1], [0, 0, 1, 1], [], []>} : vector<16x128xbf16>, vector<128x256xbf16>, vector<16x256xf32> -> vector<16x256xf32>
    %c1_12 = arith.constant 1 : index
    %c0_13 = arith.constant 0 : index
    %c0_14 = arith.constant 0 : index
    %25 = vector.load %arg3[%c1_12, %c0_13, %c0_14] : memref<4x1x256xf32, #tpu.memory_space<vmem>>, vector<1x1x256xf32>
    %26 = vector.shape_cast %25 : vector<1x1x256xf32> to vector<1x256xf32>
    %27 = vector.broadcast %26 : vector<1x256xf32> to vector<16x256xf32>
    %28 = arith.addf %24, %27 : vector<16x256xf32>
    %29 = vector.extract_strided_slice %28 {offsets = [0, 0], sizes = [16, 128], strides = [1, 1]} : vector<16x256xf32> to vector<16x128xf32>
    %cst_15 = arith.constant 0.000000e+00 : f32
    %30 = vector.broadcast %cst_15 : f32 to vector<16x128xf32>
    %31 = arith.maximumf %29, %30 : vector<16x128xf32>
    %32 = vector.extract_strided_slice %28 {offsets = [0, 128], sizes = [16, 128], strides = [1, 1]} : vector<16x256xf32> to vector<16x128xf32>
    %33 = arith.negf %32 : vector<16x128xf32>
    %34 = math.exp %33 : vector<16x128xf32>
    %cst_16 = arith.constant 1.000000e+00 : f32
    %35 = vector.broadcast %cst_16 : f32 to vector<16x128xf32>
    %36 = arith.addf %35, %34 : vector<16x128xf32>
    %37 = arith.divf %35, %36 : vector<16x128xf32>
    %38 = arith.subf %31, %20 : vector<16x128xf32>
    %39 = arith.mulf %37, %38 : vector<16x128xf32>
    %40 = arith.addf %20, %39 : vector<16x128xf32>
    %41 = arith.truncf %40 : vector<16x128xf32> to vector<16x128xbf16>
    %c2 = arith.constant 2 : index
    %c0_17 = arith.constant 0 : index
    %c0_18 = arith.constant 0 : index
    %42 = vector.load %arg2[%c2, %c0_17, %c0_18] : memref<4x128x256xbf16, #tpu.memory_space<vmem>>, vector<1x128x256xbf16>
    %43 = vector.shape_cast %42 : vector<1x128x256xbf16> to vector<128x256xbf16>
    %cst_19 = arith.constant dense<0.000000e+00> : vector<16x256xf32>
    %44 = tpu.matmul %41, %43, %cst_19 {dimension_numbers = #tpu.dot_dimension_numbers<[1], [0], [0], [1], [0, 0, 1, 1], [], []>} : vector<16x128xbf16>, vector<128x256xbf16>, vector<16x256xf32> -> vector<16x256xf32>
    %c2_20 = arith.constant 2 : index
    %c0_21 = arith.constant 0 : index
    %c0_22 = arith.constant 0 : index
    %45 = vector.load %arg3[%c2_20, %c0_21, %c0_22] : memref<4x1x256xf32, #tpu.memory_space<vmem>>, vector<1x1x256xf32>
    %46 = vector.shape_cast %45 : vector<1x1x256xf32> to vector<1x256xf32>
    %47 = vector.broadcast %46 : vector<1x256xf32> to vector<16x256xf32>
    %48 = arith.addf %44, %47 : vector<16x256xf32>
    %49 = vector.extract_strided_slice %48 {offsets = [0, 0], sizes = [16, 128], strides = [1, 1]} : vector<16x256xf32> to vector<16x128xf32>
    %cst_23 = arith.constant 0.000000e+00 : f32
    %50 = vector.broadcast %cst_23 : f32 to vector<16x128xf32>
    %51 = arith.maximumf %49, %50 : vector<16x128xf32>
    %52 = vector.extract_strided_slice %48 {offsets = [0, 128], sizes = [16, 128], strides = [1, 1]} : vector<16x256xf32> to vector<16x128xf32>
    %53 = arith.negf %52 : vector<16x128xf32>
    %54 = math.exp %53 : vector<16x128xf32>
    %cst_24 = arith.constant 1.000000e+00 : f32
    %55 = vector.broadcast %cst_24 : f32 to vector<16x128xf32>
    %56 = arith.addf %55, %54 : vector<16x128xf32>
    %57 = arith.divf %55, %56 : vector<16x128xf32>
    %58 = arith.subf %51, %40 : vector<16x128xf32>
    %59 = arith.mulf %57, %58 : vector<16x128xf32>
    %60 = arith.addf %40, %59 : vector<16x128xf32>
    %61 = arith.truncf %60 : vector<16x128xf32> to vector<16x128xbf16>
    %c3 = arith.constant 3 : index
    %c0_25 = arith.constant 0 : index
    %c0_26 = arith.constant 0 : index
    %62 = vector.load %arg2[%c3, %c0_25, %c0_26] : memref<4x128x256xbf16, #tpu.memory_space<vmem>>, vector<1x128x256xbf16>
    %63 = vector.shape_cast %62 : vector<1x128x256xbf16> to vector<128x256xbf16>
    %cst_27 = arith.constant dense<0.000000e+00> : vector<16x256xf32>
    %64 = tpu.matmul %61, %63, %cst_27 {dimension_numbers = #tpu.dot_dimension_numbers<[1], [0], [0], [1], [0, 0, 1, 1], [], []>} : vector<16x128xbf16>, vector<128x256xbf16>, vector<16x256xf32> -> vector<16x256xf32>
    %c3_28 = arith.constant 3 : index
    %c0_29 = arith.constant 0 : index
    %c0_30 = arith.constant 0 : index
    %65 = vector.load %arg3[%c3_28, %c0_29, %c0_30] : memref<4x1x256xf32, #tpu.memory_space<vmem>>, vector<1x1x256xf32>
    %66 = vector.shape_cast %65 : vector<1x1x256xf32> to vector<1x256xf32>
    %67 = vector.broadcast %66 : vector<1x256xf32> to vector<16x256xf32>
    %68 = arith.addf %64, %67 : vector<16x256xf32>
    %69 = vector.extract_strided_slice %68 {offsets = [0, 0], sizes = [16, 128], strides = [1, 1]} : vector<16x256xf32> to vector<16x128xf32>
    %cst_31 = arith.constant 0.000000e+00 : f32
    %70 = vector.broadcast %cst_31 : f32 to vector<16x128xf32>
    %71 = arith.maximumf %69, %70 : vector<16x128xf32>
    %72 = vector.extract_strided_slice %68 {offsets = [0, 128], sizes = [16, 128], strides = [1, 1]} : vector<16x256xf32> to vector<16x128xf32>
    %73 = arith.negf %72 : vector<16x128xf32>
    %74 = math.exp %73 : vector<16x128xf32>
    %cst_32 = arith.constant 1.000000e+00 : f32
    %75 = vector.broadcast %cst_32 : f32 to vector<16x128xf32>
    %76 = arith.addf %75, %74 : vector<16x128xf32>
    %77 = arith.divf %75, %76 : vector<16x128xf32>
    %78 = arith.subf %71, %60 : vector<16x128xf32>
    %79 = arith.mulf %77, %78 : vector<16x128xf32>
    %80 = arith.addf %60, %79 : vector<16x128xf32>
    %c0_33 = arith.constant 0 : index
    %c0_34 = arith.constant 0 : index
    %81 = vector.load %arg4[%c0_33, %c0_34] : memref<16x128xf32, #tpu.memory_space<vmem>>, vector<16x128xf32>
    tpu.vector_store %arg4[%c0_33, %c0_34], %80 {strides = array<i32>} : memref<16x128xf32, #tpu.memory_space<vmem>>, vector<16x128xf32>,
    return
  }
  func.func @transform_0(%arg0: i32) -> (i32, i32) {
    %c0_i32 = arith.constant 0 : i32
    %c0_i32_0 = arith.constant 0 : i32
    return %arg0, %c0_i32 : i32, i32
  }
  func.func @transform_1(%arg0: i32) -> (i32, i32, i32) {
    %c0_i32 = arith.constant 0 : i32
    %c0_i32_0 = arith.constant 0 : i32
    %c0_i32_1 = arith.constant 0 : i32
    %c0_i32_2 = arith.constant 0 : i32
    return %c0_i32, %c0_i32_0, %c0_i32_1 : i32, i32, i32
  }
  func.func @transform_2(%arg0: i32) -> (i32, i32, i32) {
    %c0_i32 = arith.constant 0 : i32
    %c0_i32_0 = arith.constant 0 : i32
    %c0_i32_1 = arith.constant 0 : i32
    %c0_i32_2 = arith.constant 0 : i32
    return %c0_i32, %c0_i32_0, %c0_i32_1 : i32, i32, i32
  }
  func.func @transform_3(%arg0: i32) -> (i32, i32) {
    %c0_i32 = arith.constant 0 : i32
    %c0_i32_0 = arith.constant 0 : i32
    return %arg0, %c0_i32 : i32, i32
  }
}

</mosaic_0001>

<llo_original>
// kernel: highwaynet_forward.1
$region0: #{highwaynet_forward.1}
  #allocation0 [shape = 'u32[]', space=smem, size = 0x4, offset = 0x4, fixed_abs, tag = 'smem constant byte address 0x4 - core index']
  #allocation1 [shape = 'u32[72,128]{1,0:T(1,128)}', space=vmem, size = 0x9000, scoped, tag = 'internal scratch']
  %s0 = inlined_call_operand.hbm [shape: f32[32,128], index: 0, kind: input, shape index: {}]
  %s1 = inlined_call_operand.hbm [shape: bf16[4,128,256], index: 1, kind: input, shape index: {}]
  %s2 = inlined_call_operand.hbm [shape: f32[4,1,256], index: 2, kind: input, shape index: {}]
  %s3 = inlined_call_operand.hbm [shape: f32[32,128], index: 3, kind: output, shape index: {}]
  %s4 = sld [smem:[#allocation0]]
  $region57: #{highwaynet_forward.1} parent=0
    _
  %s6 = ssub.s32 1, %s4
  %s7 = scalar_select 0, %s6, %s4
  $region1: #{highwaynet_forward.1} parent=0
    #allocation2 [shape = 'u8[16384]{0}', space=vmem, size = 0x4000, scoped, tag = 'input window, operand 0']
    #allocation3 [shape = 's32[2]{0}', space=sflag, size = 0x8, scoped, tag = 'scoped memory for highwaynet_forward.1']
    #allocation4 [shape = 's32[2]{0}', space=sflag, size = 0x8, scoped, tag = 'scoped memory for highwaynet_forward.1']
    #allocation5 [shape = 'u8[262144]{0}', space=vmem, size = 0x40000, scoped, tag = 'input window, operand 1, single buffered']
    #allocation6 [shape = 's32[1]{0}', space=sflag, size = 0x4, scoped, tag = 'scoped memory for highwaynet_forward.1']
    #allocation7 [shape = 'u8[4096]{0}', space=vmem, size = 0x1000, scoped, tag = 'input window, operand 2, single buffered']
    #allocation8 [shape = 'u8[16384]{0}', space=vmem, size = 0x4000, scoped, tag = 'output window, operand 0']
    %8 = vsyncpa [#allocation3], 0
    %s9 = scalar_lea.sflag [#allocation3], 1
    %10 = vsyncpa %s9, 0
    %11 = vsyncpa [#allocation6], 0
    %12 = vsyncpa [#allocation4], 0
    %s13 = scalar_lea.sflag [#allocation4], 1
    %14 = vsyncpa %s13, 0
    loop: start=0, step=1, limit=4
    $region2: #{highwaynet_forward.1} parent=1 // loop_pre_header
      _
    $region3: #{highwaynet_forward.1} parent=1 // loop_header
      %s16 = sphi 0, %s20
      %p17 = scmp.ge.s32.totalorder %s16, 4
      %s26 = sphi 0, %s28
      %s29 = sphi 0, %s26
      %s30 = sphi 0, %s29
      %s46 = sphi 0, %s30
      %s50 = sphi 0, %s50
      %s52 = sphi 0, %s50
      %s53 = sphi 0, %s52
      %s67 = sphi 0, %s53
      %s71 = sphi 0, %s71
      %s73 = sphi 0, %s71
      %s74 = sphi 0, %s73
      %s88 = sphi 0, %s74
      %s94 = sphi 0, %s96
      %s97 = sphi 0, %s94
      %s98 = sphi 0, %s97
      %s114 = sphi 0, %s98
    $region4: #{highwaynet_forward.1} parent=1 // loop_header_branch
      %19 = sbr.rel (%p17) target = $region8
    $region5: #{highwaynet_forward.1} parent=1 // loop_body
      %s21 = ssub.s32 %s16, 1
      %s22 = ssub.s32 %s16, 2
      %s23 = sadd.s32 %s16, 1
      %s24 = ssub.s32 %s16, %s23
      %p25 = scmp.eq.s32.totalorder %s24, 0
      %s27 = sadd.s32 %s26, 1
      %s28 = scalar_select %p25, %s26, %s27
      %p31 = pneg %p25
      %p32 = scmp.eq.s32.totalorder %s16, 1
      %p33 = por %p31, %p32
      %p34 = scmp.ne.s32.totalorder %s26, %s29
      %p35 = scmp.eq.s32.totalorder %s16, 0
      %p36 = por %p34, %p35
      %p37 = scmp.ne.s32.totalorder %s26, %s29
      %p38 = scmp.eq.s32.totalorder %s21, 1
      %p39 = por %p37, %p38
      %p40 = scmp.ne.s32.totalorder %s29, %s30
      %p41 = scmp.eq.s32.totalorder %s21, 0
      %p42 = por %p40, %p41
      %p43 = scmp.ne.s32.totalorder %s29, %s30
      %p44 = scmp.eq.s32.totalorder %s22, 1
      %p45 = por %p43, %p44
      %p47 = scmp.ne.s32.totalorder %s30, %s46
      %p48 = scmp.eq.s32.totalorder %s22, 0
      %p49 = por %p47, %p48
      %s51 = sadd.s32 %s50, 1
      %p54 = scmp.eq.s32.totalorder %s16, 1
      %p55 = scmp.ne.s32.totalorder %s50, %s52
      %p56 = scmp.eq.s32.totalorder %s16, 0
      %p57 = por %p55, %p56
      %p58 = scmp.ne.s32.totalorder %s50, %s52
      %p59 = scmp.eq.s32.totalorder %s21, 1
      %p60 = por %p58, %p59
      %p61 = scmp.ne.s32.totalorder %s52, %s53
      %p62 = scmp.eq.s32.totalorder %s21, 0
      %p63 = por %p61, %p62
      %p64 = scmp.ne.s32.totalorder %s52, %s53
      %p65 = scmp.eq.s32.totalorder %s22, 1
      %p66 = por %p64, %p65
      %p68 = scmp.ne.s32.totalorder %s53, %s67
      %p69 = scmp.eq.s32.totalorder %s22, 0
      %p70 = por %p68, %p69
      %s72 = sadd.s32 %s71, 1
      %p75 = scmp.eq.s32.totalorder %s16, 1
      %p76 = scmp.ne.s32.totalorder %s71, %s73
      %p77 = scmp.eq.s32.totalorder %s16, 0
      %p78 = por %p76, %p77
      %p79 = scmp.ne.s32.totalorder %s71, %s73
      %p80 = scmp.eq.s32.totalorder %s21, 1
      %p81 = por %p79, %p80
      %p82 = scmp.ne.s32.totalorder %s73, %s74
      %p83 = scmp.eq.s32.totalorder %s21, 0
      %p84 = por %p82, %p83
      %p85 = scmp.ne.s32.totalorder %s73, %s74
      %p86 = scmp.eq.s32.totalorder %s22, 1
      %p87 = por %p85, %p86
      %p89 = scmp.ne.s32.totalorder %s74, %s88
      %p90 = scmp.eq.s32.totalorder %s22, 0
      %p91 = por %p89, %p90
      %s92 = ssub.s32 %s16, %s23
      %p93 = scmp.eq.s32.totalorder %s92, 0
      %s95 = sadd.s32 %s94, 1
      %s96 = scalar_select %p93, %s94, %s95
      %p99 = pneg %p93
      %p100 = scmp.eq.s32.totalorder %s16, 1
      %p101 = por %p99, %p100
      %p102 = scmp.ne.s32.totalorder %s94, %s97
      %p103 = scmp.eq.s32.totalorder %s16, 0
      %p104 = por %p102, %p103
      %p105 = scmp.ne.s32.totalorder %s94, %s97
      %p106 = scmp.eq.s32.totalorder %s21, 1
      %p107 = por %p105, %p106
      %p108 = scmp.ne.s32.totalorder %s97, %s98
      %p109 = scmp.eq.s32.totalorder %s21, 0
      %p110 = por %p108, %p109
      %p111 = scmp.ne.s32.totalorder %s97, %s98
      %p112 = scmp.eq.s32.totalorder %s22, 1
      %p113 = por %p111, %p112
      %p115 = scmp.ne.s32.totalorder %s98, %s114
      %p116 = scmp.eq.s32.totalorder %s22, 0
      %p117 = por %p115, %p116
      %p118 = scmp.le.s32.totalorder 1, %s16
      %p119 = scmp.lt.s32.totalorder %s16, 3
      %p120 = pnand %p118, %p119
      %p121 = pneg %p120
      // Predicated region
      $region9: #{highwaynet_forward.1} parent=5 // pred_check
        _
      $region10: #{highwaynet_forward.1} parent=5 // pred_check_branch
        %123 = sbr.rel (%p120) target = $region12
      $region11: #{highwaynet_forward.1} parent=5 // pred_region
        %s124 = ssub.s32 %s16, 1
        // Predicated region
        $region13: #{highwaynet_forward.1} parent=11 // pred_check
          %p125 = pneg %p63
        $region14: #{highwaynet_forward.1} parent=11 // pred_check_branch
          %127 = sbr.rel (%p125) target = $region16
        $region15: #{highwaynet_forward.1} parent=11 // pred_region
          %129 = vsyncadd [#allocation6], 0
          %s130 = sshll.u32 %s1, 4
          %s131 = int_to_ptr.hbm [resolvable:$true] %s130
          %s132 = sshll.u32 [#allocation5], 4
          %s133 = int_to_ptr.vmem [resolvable:$true] %s132
          %138 = dma.hbm_to_vmem [thread:$0]  %s131, 8192, %s133, [#allocation6], 128, 128, 8
        $region16: #{highwaynet_forward.1} parent=11 // pred_fallthru
          _
        // Predicated region
        $region17: #{highwaynet_forward.1} parent=11 // pred_check
          %p139 = pneg %p84
        $region18: #{highwaynet_forward.1} parent=11 // pred_check_branch
          %141 = sbr.rel (%p139) target = $region20
        $region19: #{highwaynet_forward.1} parent=11 // pred_region
          %143 = vsyncadd [#allocation6], 0
          %s144 = sshll.u32 %s2, 4
          %s145 = int_to_ptr.hbm [resolvable:$true] %s144
          %s146 = sshll.u32 [#allocation7], 4
          %s147 = int_to_ptr.vmem [resolvable:$true] %s146
          %152 = dma.hbm_to_vmem [thread:$0]  %s145, 128, %s147, [#allocation6], 32, 32, 2
        $region20: #{highwaynet_forward.1} parent=11 // pred_fallthru
          _
      $region12: #{highwaynet_forward.1} parent=5 // pred_fallthru
        _
      %p153 = scmp.lt.s32.totalorder %s16, 2
      // Predicated region
      $region21: #{highwaynet_forward.1} parent=5 // pred_check
        %p154 = pneg %p153
      $region22: #{highwaynet_forward.1} parent=5 // pred_check_branch
        %156 = sbr.rel (%p154) target = $region24
      $region23: #{highwaynet_forward.1} parent=5 // pred_region
        // Predicated region
        $region25: #{highwaynet_forward.1} parent=23 // pred_check
          %p157 = pneg %p36
        $region26: #{highwaynet_forward.1} parent=23 // pred_check_branch
          %159 = sbr.rel (%p157) target = $region28
        $region27: #{highwaynet_forward.1} parent=23 // pred_region
          %s160 = sand.u32 %s26, 1
          %s161 = scalar_lea.sflag [#allocation3], %s160
          %s162 = sand.u32 %s26, 1
          %s163 = smul.addr %s162, 16
          %s164 = scalar_lea.vmem [#allocation2], %s163
          %s165 = smul.u32 2, %s16
          %167 = vsyncadd %s161, 0
          %s168 = smul.addr %s165, 8
          %s169 = scalar_lea.hbm %s0, %s168
          %s170 = sshll.u32 %s169, 4
          %s171 = int_to_ptr.hbm [resolvable:$true] %s170
          %s172 = sshll.u32 %s164, 4
          %s173 = int_to_ptr.vmem [resolvable:$true] %s172
          %178 = dma.hbm_to_vmem [thread:$0]  %s171, 256, %s173, %s161, 128, 128, 8
        $region28: #{highwaynet_forward.1} parent=23 // pred_fallthru
          _
      $region24: #{highwaynet_forward.1} parent=5 // pred_fallthru
        _
      %p179 = scmp.le.s32.totalorder 1, %s16
      %p180 = scmp.lt.s32.totalorder %s16, 3
      %p181 = pnand %p179, %p180
      %p182 = pneg %p181
      // Predicated region
      $region29: #{highwaynet_forward.1} parent=5 // pred_check
        _
      $region30: #{highwaynet_forward.1} parent=5 // pred_check_branch
        %184 = sbr.rel (%p181) target = $region32
      $region31: #{highwaynet_forward.1} parent=5 // pred_region
        %s185 = ssub.s32 %s16, 1
        %s186 = sand.u32 %s29, 1
        %s187 = scalar_lea.sflag [#allocation3], %s186
        %s188 = sand.u32 %s29, 1
        %s189 = smul.addr %s188, 16
        %s190 = scalar_lea.vmem [#allocation2], %s189
        // Predicated region
        $region33: #{highwaynet_forward.1} parent=31 // pred_check
          %p191 = pneg %p42
        $region34: #{highwaynet_forward.1} parent=31 // pred_check_branch
          %193 = sbr.rel (%p191) target = $region36
        $region35: #{highwaynet_forward.1} parent=31 // pred_region
          %195 = dma.done %s187, 256
        $region36: #{highwaynet_forward.1} parent=31 // pred_fallthru
          _
        // Predicated region
        $region37: #{highwaynet_forward.1} parent=31 // pred_check
          %p196 = pneg %p63
        $region38: #{highwaynet_forward.1} parent=31 // pred_check_branch
          %198 = sbr.rel (%p196) target = $region40
        $region39: #{highwaynet_forward.1} parent=31 // pred_region
          %200 = dma.done [#allocation6], 8192
        $region40: #{highwaynet_forward.1} parent=31 // pred_fallthru
          _
        // Predicated region
        $region41: #{highwaynet_forward.1} parent=31 // pred_check
          %p201 = pneg %p84
        $region42: #{highwaynet_forward.1} parent=31 // pred_check_branch
          %203 = sbr.rel (%p201) target = $region44
        $region43: #{highwaynet_forward.1} parent=31 // pred_region
          %205 = dma.done [#allocation6], 128
        $region44: #{highwaynet_forward.1} parent=31 // pred_fallthru
          _
        %s206 = sand.u32 %s29, 1
        %s207 = scalar_lea.sflag [#allocation3], %s206
        %s208 = sand.u32 %s29, 1
        %s209 = smul.addr %s208, 16
        %s210 = scalar_lea.vmem [#allocation2], %s209
        %p211 = pneg %p42
        %p212 = pneg %p39
        %p213 = pneg %p63
        %p214 = pneg %p60
        %p215 = pneg %p84
        %p216 = pneg %p81
        %p217 = pneg %p110
        %p218 = pneg %p107
        %s219 = sand.u32 %s97, 1
        %s220 = scalar_lea.sflag [#allocation4], %s219
        %s221 = sand.u32 %s97, 1
        %s222 = smul.addr %s221, 16
        %s223 = scalar_lea.vmem [#allocation8], %s222
        %s224 = smul.u32 2, %s21
        %s225 = smul.u32 2, %s21
        %v226 = vld [vmem:[%s190] sm:$0xff]
        %v227 = vld [vmem:[%s190 + $0x8] sm:$0xff]
        %v228 = vpack.c.bf16 %v227, %v226
        %v229 = vld [vmem:[#allocation5] sm:$0xff]
        %v230 = vld [vmem:[#allocation5 + $0x8] sm:$0xff]
        %v231 = vld [vmem:[#allocation5 + $0x10] sm:$0xff]
        %v232 = vld [vmem:[#allocation5 + $0x18] sm:$0xff]
        %v233 = vld [vmem:[#allocation5 + $0x20] sm:$0xff]
        %v234 = vld [vmem:[#allocation5 + $0x28] sm:$0xff]
        %v235 = vld [vmem:[#allocation5 + $0x30] sm:$0xff]
        %v236 = vld [vmem:[#allocation5 + $0x38] sm:$0xff]
        %v237 = vld [vmem:[#allocation5 + $0x40] sm:$0xff]
        %v238 = vld [vmem:[#allocation5 + $0x48] sm:$0xff]
        %v239 = vld [vmem:[#allocation5 + $0x50] sm:$0xff]
        %v240 = vld [vmem:[#allocation5 + $0x58] sm:$0xff]
        %v241 = vld [vmem:[#allocation5 + $0x60] sm:$0xff]
        %v242 = vld [vmem:[#allocation5 + $0x68] sm:$0xff]
        %v243 = vld [vmem:[#allocation5 + $0x70] sm:$0xff]
        %v244 = vld [vmem:[#allocation5 + $0x78] sm:$0xff]
        %v245 = vld [vmem:[#allocation7] sm:$0x3]
        %v247 = vperm.slane %v245, 0
        %v248 = vperm.slane %v245, 1
        %v267 = vunpack.c.l.b16 %v229
        %v268 = vunpack.c.h.b16 %v229
        %v269 = vunpack.c.l.b16 %v230
        %v270 = vunpack.c.h.b16 %v230
        %v271 = vunpack.c.l.b16 %v231
        %v272 = vunpack.c.h.b16 %v231
        %v273 = vunpack.c.l.b16 %v232
        %v274 = vunpack.c.h.b16 %v232
        %v275 = vunpack.c.l.b16 %v233
        %v276 = vunpack.c.h.b16 %v233
        %v277 = vunpack.c.l.b16 %v234
        %v278 = vunpack.c.h.b16 %v234
        %v279 = vunpack.c.l.b16 %v235
        %v280 = vunpack.c.h.b16 %v235
        %v281 = vunpack.c.l.b16 %v236
        %v282 = vunpack.c.h.b16 %v236
        %v283 = vunpack.c.l.b16 %v237
        %v284 = vunpack.c.h.b16 %v237
        %v285 = vunpack.c.l.b16 %v238
        %v286 = vunpack.c.h.b16 %v238
        %v287 = vunpack.c.l.b16 %v239
        %v288 = vunpack.c.h.b16 %v239
        %v289 = vunpack.c.l.b16 %v240
        %v290 = vunpack.c.h.b16 %v240
        %v291 = vunpack.c.l.b16 %v241
        %v292 = vunpack.c.h.b16 %v241
        %v293 = vunpack.c.l.b16 %v242
        %v294 = vunpack.c.h.b16 %v242
        %v295 = vunpack.c.l.b16 %v243
        %v296 = vunpack.c.h.b16 %v243
        %v297 = vunpack.c.l.b16 %v244
        %v298 = vunpack.c.h.b16 %v244
        %v299 = vpack.c.b16 %v269, %v267
        %v300 = vpack.c.b16 %v270, %v268
        %v301 = vpack.c.b16 %v273, %v271
        %v302 = vpack.c.b16 %v274, %v272
        %v303 = vpack.c.b16 %v277, %v275
        %v304 = vpack.c.b16 %v278, %v276
        %v305 = vpack.c.b16 %v281, %v279
        %v306 = vpack.c.b16 %v282, %v280
        %v307 = vpack.c.b16 %v285, %v283
        %v308 = vpack.c.b16 %v286, %v284
        %v309 = vpack.c.b16 %v289, %v287
        %v310 = vpack.c.b16 %v290, %v288
        %v311 = vpack.c.b16 %v293, %v291
        %v312 = vpack.c.b16 %v294, %v292
        %v313 = vpack.c.b16 %v297, %v295
        %v314 = vpack.c.b16 %v298, %v296
        %331 = vmatpush.bf16.msra.mxu0 %v313
        %332 = vmatpush.bf16.msra.mxu0 %v311
        %333 = vmatpush.bf16.msra.mxu0 %v309
        %334 = vmatpush.bf16.msra.mxu0 %v307
        %335 = vmatpush.bf16.msra.mxu0 %v305
        %336 = vmatpush.bf16.msra.mxu0 %v303
        %337 = vmatpush.bf16.msra.mxu0 %v301
        %338 = vmatpush.bf16.msra.mxu0 %v299
        %339 = vmatmul.bf16.gmra.mxu0 %v228
        %v340 = vpop.f32.mrf.mxu0
        %v341 = vadd.f32 %v247, %v340
        %v342 = vpop.f32.mrf.mxu0
        %v343 = vadd.f32 %v247, %v342
        %344 = vdwg.mxu0
        %345 = vmatpush.bf16.msra.mxu0 %v314
        %346 = vmatpush.bf16.msra.mxu0 %v312
        %347 = vmatpush.bf16.msra.mxu0 %v310
        %348 = vmatpush.bf16.msra.mxu0 %v308
        %349 = vmatpush.bf16.msra.mxu0 %v306
        %350 = vmatpush.bf16.msra.mxu0 %v304
        %351 = vmatpush.bf16.msra.mxu0 %v302
        %352 = vmatpush.bf16.msra.mxu0 %v300
        %353 = vmatmul.bf16.gmra.mxu0 %v228
        %v354 = vpop.f32.mrf.mxu0
        %v355 = vadd.f32 %v248, %v354
        %v356 = vpop.f32.mrf.mxu0
        %v357 = vadd.f32 %v248, %v356
        %358 = vdwg.mxu0
        %v359 = vmax.f32 %v341, 0.0
        %v360 = vmax.f32 %v343, 0.0
        %v361 = vxor.u32 %v355, 2147483648
        %v362 = vxor.u32 %v357, 2147483648
        %v363 = vmul.f32 %v361, 1.442695
        %v364 = vpow.pop %v363
        %v365 = vmul.f32 %v362, 1.442695
        %v366 = vpow.pop %v365
        %v367 = vadd.f32 %v364, 1.0
        %v368 = vadd.f32 %v366, 1.0
        %v369 = vrcp.pop %v367
        %v370 = vmul.f32 %v367, %v369
        %v371 = vsub.f32 1.0, %v370
        %v372 = vmul.f32 %v369, %v371
        %v373 = vadd.f32 %v369, %v372
        %vm374 = vweird.f32 %v367
        %vm375 = vweird.f32 %v369
        %vm376 = vmor %vm374, %vm375
        %v377 = vsel %vm376, %v369, %v373
        %v378 = vand.u32 2147483647, %v367
        %vm379 = vcmp.eq.f32.partialorder %v378, 8.507059e+37
        %v380 = vand.u32 %v367, 2147483648
        %v381 = vor.u32 1.1754944e-38, %v380
        %v382 = vsel %vm379, %v381, %v377
        %v383 = vmul.f32 1.0, %v382
        %v384 = vrcp.pop %v368
        %v385 = vmul.f32 %v368, %v384
        %v386 = vsub.f32 1.0, %v385
        %v387 = vmul.f32 %v384, %v386
        %v388 = vadd.f32 %v384, %v387
        %vm389 = vweird.f32 %v368
        %vm390 = vweird.f32 %v384
        %vm391 = vmor %vm389, %vm390
        %v392 = vsel %vm391, %v384, %v388
        %v393 = vand.u32 2147483647, %v368
        %vm394 = vcmp.eq.f32.partialorder %v393, 8.507059e+37
        %v395 = vand.u32 %v368, 2147483648
        %v396 = vor.u32 1.1754944e-38, %v395
        %v397 = vsel %vm394, %v396, %v392
        %v398 = vmul.f32 1.0, %v397
        %v399 = vsub.f32 %v359, %v226
        %v400 = vsub.f32 %v360, %v227
        %v401 = vmul.f32 %v383, %v399
        %v402 = vmul.f32 %v398, %v400
        %v403 = vadd.f32 %v226, %v401
        %v404 = vadd.f32 %v227, %v402
        %v405 = vpack.c.bf16 %v404, %v403
        %s406 = scalar_lea.vmem [#allocation5], 128
        %v407 = vld [vmem:[%s406] sm:$0xff]
        %v408 = vld [vmem:[%s406 + $0x8] sm:$0xff]
        %v409 = vld [vmem:[%s406 + $0x10] sm:$0xff]
        %v410 = vld [vmem:[%s406 + $0x18] sm:$0xff]
        %v411 = vld [vmem:[%s406 + $0x20] sm:$0xff]
        %v412 = vld [vmem:[%s406 + $0x28] sm:$0xff]
        %v413 = vld [vmem:[%s406 + $0x30] sm:$0xff]
        %v414 = vld [vmem:[%s406 + $0x38] sm:$0xff]
        %v415 = vld [vmem:[%s406 + $0x40] sm:$0xff]
        %v416 = vld [vmem:[%s406 + $0x48] sm:$0xff]
        %v417 = vld [vmem:[%s406 + $0x50] sm:$0xff]
        %v418 = vld [vmem:[%s406 + $0x58] sm:$0xff]
        %v419 = vld [vmem:[%s406 + $0x60] sm:$0xff]
        %v420 = vld [vmem:[%s406 + $0x68] sm:$0xff]
        %v421 = vld [vmem:[%s406 + $0x70] sm:$0xff]
        %v422 = vld [vmem:[%s406 + $0x78] sm:$0xff]
        %s423 = scalar_lea.vmem [#allocation7], 2
        %v424 = vld [vmem:[%s423] sm:$0x3]
        %v426 = vperm.slane %v424, 0
        %v427 = vperm.slane %v424, 1
        %v446 = vunpack.c.l.b16 %v407
        %v447 = vunpack.c.h.b16 %v407
        %v448 = vunpack.c.l.b16 %v408
        %v449 = vunpack.c.h.b16 %v408
        %v450 = vunpack.c.l.b16 %v409
        %v451 = vunpack.c.h.b16 %v409
        %v452 = vunpack.c.l.b16 %v410
        %v453 = vunpack.c.h.b16 %v410
        %v454 = vunpack.c.l.b16 %v411
        %v455 = vunpack.c.h.b16 %v411
        %v456 = vunpack.c.l.b16 %v412
        %v457 = vunpack.c.h.b16 %v412
        %v458 = vunpack.c.l.b16 %v413
        %v459 = vunpack.c.h.b16 %v413
        %v460 = vunpack.c.l.b16 %v414
        %v461 = vunpack.c.h.b16 %v414
        %v462 = vunpack.c.l.b16 %v415
        %v463 = vunpack.c.h.b16 %v415
        %v464 = vunpack.c.l.b16 %v416
        %v465 = vunpack.c.h.b16 %v416
        %v466 = vunpack.c.l.b16 %v417
        %v467 = vunpack.c.h.b16 %v417
        %v468 = vunpack.c.l.b16 %v418
        %v469 = vunpack.c.h.b16 %v418
        %v470 = vunpack.c.l.b16 %v419
        %v471 = vunpack.c.h.b16 %v419
        %v472 = vunpack.c.l.b16 %v420
        %v473 = vunpack.c.h.b16 %v420
        %v474 = vunpack.c.l.b16 %v421
        %v475 = vunpack.c.h.b16 %v421
        %v476 = vunpack.c.l.b16 %v422
        %v477 = vunpack.c.h.b16 %v422
        %v478 = vpack.c.b16 %v448, %v446
        %v479 = vpack.c.b16 %v449, %v447
        %v480 = vpack.c.b16 %v452, %v450
        %v481 = vpack.c.b16 %v453, %v451
        %v482 = vpack.c.b16 %v456, %v454
        %v483 = vpack.c.b16 %v457, %v455
        %v484 = vpack.c.b16 %v460, %v458
        %v485 = vpack.c.b16 %v461, %v459
        %v486 = vpack.c.b16 %v464, %v462
        %v487 = vpack.c.b16 %v465, %v463
        %v488 = vpack.c.b16 %v468, %v466
        %v489 = vpack.c.b16 %v469, %v467
        %v490 = vpack.c.b16 %v472, %v470
        %v491 = vpack.c.b16 %v473, %v471
        %v492 = vpack.c.b16 %v476, %v474
        %v493 = vpack.c.b16 %v477, %v475
        %510 = vmatpush.bf16.msra.mxu0 %v492
        %511 = vmatpush.bf16.msra.mxu0 %v490
        %512 = vmatpush.bf16.msra.mxu0 %v488
        %513 = vmatpush.bf16.msra.mxu0 %v486
        %514 = vmatpush.bf16.msra.mxu0 %v484
        %515 = vmatpush.bf16.msra.mxu0 %v482
        %516 = vmatpush.bf16.msra.mxu0 %v480
        %517 = vmatpush.bf16.msra.mxu0 %v478
        %518 = vmatmul.bf16.gmra.mxu0 %v405
        %v519 = vpop.f32.mrf.mxu0
        %v520 = vadd.f32 %v426, %v519
        %v521 = vpop.f32.mrf.mxu0
        %v522 = vadd.f32 %v426, %v521
        %523 = vdwg.mxu0
        %524 = vmatpush.bf16.msra.mxu0 %v493
        %525 = vmatpush.bf16.msra.mxu0 %v491
        %526 = vmatpush.bf16.msra.mxu0 %v489
        %527 = vmatpush.bf16.msra.mxu0 %v487
        %528 = vmatpush.bf16.msra.mxu0 %v485
        %529 = vmatpush.bf16.msra.mxu0 %v483
        %530 = vmatpush.bf16.msra.mxu0 %v481
        %531 = vmatpush.bf16.msra.mxu0 %v479
        %532 = vmatmul.bf16.gmra.mxu0 %v405
        %v533 = vpop.f32.mrf.mxu0
        %v534 = vadd.f32 %v427, %v533
        %v535 = vpop.f32.mrf.mxu0
        %v536 = vadd.f32 %v427, %v535
        %537 = vdwg.mxu0
        %v538 = vmax.f32 %v520, 0.0
        %v539 = vmax.f32 %v522, 0.0
        %v540 = vxor.u32 %v534, 2147483648
        %v541 = vxor.u32 %v536, 2147483648
        %v542 = vmul.f32 %v540, 1.442695
        %v543 = vpow.pop %v542
        %v544 = vmul.f32 %v541, 1.442695
        %v545 = vpow.pop %v544
        %v546 = vadd.f32 %v543, 1.0
        %v547 = vadd.f32 %v545, 1.0
        %v548 = vrcp.pop %v546
        %v549 = vmul.f32 %v546, %v548
        %v550 = vsub.f32 1.0, %v549
        %v551 = vmul.f32 %v548, %v550
        %v552 = vadd.f32 %v548, %v551
        %vm553 = vweird.f32 %v546
        %vm554 = vweird.f32 %v548
        %vm555 = vmor %vm553, %vm554
        %v556 = vsel %vm555, %v548, %v552
        %v557 = vand.u32 2147483647, %v546
        %vm558 = vcmp.eq.f32.partialorder %v557, 8.507059e+37
        %v559 = vand.u32 %v546, 2147483648
        %v560 = vor.u32 1.1754944e-38, %v559
        %v561 = vsel %vm558, %v560, %v556
        %v562 = vmul.f32 1.0, %v561
        %v563 = vrcp.pop %v547
        %v564 = vmul.f32 %v547, %v563
        %v565 = vsub.f32 1.0, %v564
        %v566 = vmul.f32 %v563, %v565
        %v567 = vadd.f32 %v563, %v566
        %vm568 = vweird.f32 %v547
        %vm569 = vweird.f32 %v563
        %vm570 = vmor %vm568, %vm569
        %v571 = vsel %vm570, %v563, %v567
        %v572 = vand.u32 2147483647, %v547
        %vm573 = vcmp.eq.f32.partialorder %v572, 8.507059e+37
        %v574 = vand.u32 %v547, 2147483648
        %v575 = vor.u32 1.1754944e-38, %v574
        %v576 = vsel %vm573, %v575, %v571
        %v577 = vmul.f32 1.0, %v576
        %v578 = vsub.f32 %v538, %v403
        %v579 = vsub.f32 %v539, %v404
        %v580 = vmul.f32 %v562, %v578
        %v581 = vmul.f32 %v577, %v579
        %v582 = vadd.f32 %v403, %v580
        %v583 = vadd.f32 %v404, %v581
        %v584 = vpack.c.bf16 %v583, %v582
        %s585 = scalar_lea.vmem [#allocation5], 256
        %v586 = vld [vmem:[%s585] sm:$0xff]
        %v587 = vld [vmem:[%s585 + $0x8] sm:$0xff]
        %v588 = vld [vmem:[%s585 + $0x10] sm:$0xff]
        %v589 = vld [vmem:[%s585 + $0x18] sm:$0xff]
        %v590 = vld [vmem:[%s585 + $0x20] sm:$0xff]
        %v591 = vld [vmem:[%s585 + $0x28] sm:$0xff]
        %v592 = vld [vmem:[%s585 + $0x30] sm:$0xff]
        %v593 = vld [vmem:[%s585 + $0x38] sm:$0xff]
        %v594 = vld [vmem:[%s585 + $0x40] sm:$0xff]
        %v595 = vld [vmem:[%s585 + $0x48] sm:$0xff]
        %v596 = vld [vmem:[%s585 + $0x50] sm:$0xff]
        %v597 = vld [vmem:[%s585 + $0x58] sm:$0xff]
        %v598 = vld [vmem:[%s585 + $0x60] sm:$0xff]
        %v599 = vld [vmem:[%s585 + $0x68] sm:$0xff]
        %v600 = vld [vmem:[%s585 + $0x70] sm:$0xff]
        %v601 = vld [vmem:[%s585 + $0x78] sm:$0xff]
        %s602 = scalar_lea.vmem [#allocation7], 4
        %v603 = vld [vmem:[%s602] sm:$0x3]
        %v605 = vperm.slane %v603, 0
        %v606 = vperm.slane %v603, 1
        %v625 = vunpack.c.l.b16 %v586
        %v626 = vunpack.c.h.b16 %v586
        %v627 = vunpack.c.l.b16 %v587
        %v628 = vunpack.c.h.b16 %v587
        %v629 = vunpack.c.l.b16 %v588
        %v630 = vunpack.c.h.b16 %v588
        %v631 = vunpack.c.l.b16 %v589
        %v632 = vunpack.c.h.b16 %v589
        %v633 = vunpack.c.l.b16 %v590
        %v634 = vunpack.c.h.b16 %v590
        %v635 = vunpack.c.l.b16 %v591
        %v636 = vunpack.c.h.b16 %v591
        %v637 = vunpack.c.l.b16 %v592
        %v638 = vunpack.c.h.b16 %v592
        %v639 = vunpack.c.l.b16 %v593
        %v640 = vunpack.c.h.b16 %v593
        %v641 = vunpack.c.l.b16 %v594
        %v642 = vunpack.c.h.b16 %v594
        %v643 = vunpack.c.l.b16 %v595
        %v644 = vunpack.c.h.b16 %v595
        %v645 = vunpack.c.l.b16 %v596
        %v646 = vunpack.c.h.b16 %v596
        %v647 = vunpack.c.l.b16 %v597
        %v648 = vunpack.c.h.b16 %v597
        %v649 = vunpack.c.l.b16 %v598
        %v650 = vunpack.c.h.b16 %v598
        %v651 = vunpack.c.l.b16 %v599
        %v652 = vunpack.c.h.b16 %v599
        %v653 = vunpack.c.l.b16 %v600
        %v654 = vunpack.c.h.b16 %v600
        %v655 = vunpack.c.l.b16 %v601
        %v656 = vunpack.c.h.b16 %v601
        %v657 = vpack.c.b16 %v627, %v625
        %v658 = vpack.c.b16 %v628, %v626
        %v659 = vpack.c.b16 %v631, %v629
        %v660 = vpack.c.b16 %v632, %v630
        %v661 = vpack.c.b16 %v635, %v633
        %v662 = vpack.c.b16 %v636, %v634
        %v663 = vpack.c.b16 %v639, %v637
        %v664 = vpack.c.b16 %v640, %v638
        %v665 = vpack.c.b16 %v643, %v641
        %v666 = vpack.c.b16 %v644, %v642
        %v667 = vpack.c.b16 %v647, %v645
        %v668 = vpack.c.b16 %v648, %v646
        %v669 = vpack.c.b16 %v651, %v649
        %v670 = vpack.c.b16 %v652, %v650
        %v671 = vpack.c.b16 %v655, %v653
        %v672 = vpack.c.b16 %v656, %v654
        %689 = vmatpush.bf16.msra.mxu0 %v671
        %690 = vmatpush.bf16.msra.mxu0 %v669
        %691 = vmatpush.bf16.msra.mxu0 %v667
        %692 = vmatpush.bf16.msra.mxu0 %v665
        %693 = vmatpush.bf16.msra.mxu0 %v663
        %694 = vmatpush.bf16.msra.mxu0 %v661
        %695 = vmatpush.bf16.msra.mxu0 %v659
        %696 = vmatpush.bf16.msra.mxu0 %v657
        %697 = vmatmul.bf16.gmra.mxu0 %v584
        %v698 = vpop.f32.mrf.mxu0
        %v699 = vadd.f32 %v605, %v698
        %v700 = vpop.f32.mrf.mxu0
        %v701 = vadd.f32 %v605, %v700
        %702 = vdwg.mxu0
        %703 = vmatpush.bf16.msra.mxu0 %v672
        %704 = vmatpush.bf16.msra.mxu0 %v670
        %705 = vmatpush.bf16.msra.mxu0 %v668
        %706 = vmatpush.bf16.msra.mxu0 %v666
        %707 = vmatpush.bf16.msra.mxu0 %v664
        %708 = vmatpush.bf16.msra.mxu0 %v662
        %709 = vmatpush.bf16.msra.mxu0 %v660
        %710 = vmatpush.bf16.msra.mxu0 %v658
        %711 = vmatmul.bf16.gmra.mxu0 %v584
        %v712 = vpop.f32.mrf.mxu0
        %v713 = vadd.f32 %v606, %v712
        %v714 = vpop.f32.mrf.mxu0
        %v715 = vadd.f32 %v606, %v714
        %716 = vdwg.mxu0
        %v717 = vmax.f32 %v699, 0.0
        %v718 = vmax.f32 %v701, 0.0
        %v719 = vxor.u32 %v713, 2147483648
        %v720 = vxor.u32 %v715, 2147483648
        %v721 = vmul.f32 %v719, 1.442695
        %v722 = vpow.pop %v721
        %v723 = vmul.f32 %v720, 1.442695
        %v724 = vpow.pop %v723
        %v725 = vadd.f32 %v722, 1.0
        %v726 = vadd.f32 %v724, 1.0
        %v727 = vrcp.pop %v725
        %v728 = vmul.f32 %v725, %v727
        %v729 = vsub.f32 1.0, %v728
        %v730 = vmul.f32 %v727, %v729
        %v731 = vadd.f32 %v727, %v730
        %vm732 = vweird.f32 %v725
        %vm733 = vweird.f32 %v727
        %vm734 = vmor %vm732, %vm733
        %v735 = vsel %vm734, %v727, %v731
        %v736 = vand.u32 2147483647, %v725
        %vm737 = vcmp.eq.f32.partialorder %v736, 8.507059e+37
        %v738 = vand.u32 %v725, 2147483648
        %v739 = vor.u32 1.1754944e-38, %v738
        %v740 = vsel %vm737, %v739, %v735
        %v741 = vmul.f32 1.0, %v740
        %v742 = vrcp.pop %v726
        %v743 = vmul.f32 %v726, %v742
        %v744 = vsub.f32 1.0, %v743
        %v745 = vmul.f32 %v742, %v744
        %v746 = vadd.f32 %v742, %v745
        %vm747 = vweird.f32 %v726
        %vm748 = vweird.f32 %v742
        %vm749 = vmor %vm747, %vm748
        %v750 = vsel %vm749, %v742, %v746
        %v751 = vand.u32 2147483647, %v726
        %vm752 = vcmp.eq.f32.partialorder %v751, 8.507059e+37
        %v753 = vand.u32 %v726, 2147483648
        %v754 = vor.u32 1.1754944e-38, %v753
        %v755 = vsel %vm752, %v754, %v750
        %v756 = vmul.f32 1.0, %v755
        %v757 = vsub.f32 %v717, %v582
        %v758 = vsub.f32 %v718, %v583
        %v759 = vmul.f32 %v741, %v757
        %v760 = vmul.f32 %v756, %v758
        %v761 = vadd.f32 %v582, %v759
        %v762 = vadd.f32 %v583, %v760
        %v763 = vpack.c.bf16 %v762, %v761
        %s764 = scalar_lea.vmem [#allocation5], 384
        %v765 = vld [vmem:[%s764] sm:$0xff]
        %v766 = vld [vmem:[%s764 + $0x8] sm:$0xff]
        %v767 = vld [vmem:[%s764 + $0x10] sm:$0xff]
        %v768 = vld [vmem:[%s764 + $0x18] sm:$0xff]
        %v769 = vld [vmem:[%s764 + $0x20] sm:$0xff]
        %v770 = vld [vmem:[%s764 + $0x28] sm:$0xff]
        %v771 = vld [vmem:[%s764 + $0x30] sm:$0xff]
        %v772 = vld [vmem:[%s764 + $0x38] sm:$0xff]
        %v773 = vld [vmem:[%s764 + $0x40] sm:$0xff]
        %v774 = vld [vmem:[%s764 + $0x48] sm:$0xff]
        %v775 = vld [vmem:[%s764 + $0x50] sm:$0xff]
        %v776 = vld [vmem:[%s764 + $0x58] sm:$0xff]
        %v777 = vld [vmem:[%s764 + $0x60] sm:$0xff]
        %v778 = vld [vmem:[%s764 + $0x68] sm:$0xff]
        %v779 = vld [vmem:[%s764 + $0x70] sm:$0xff]
        %v780 = vld [vmem:[%s764 + $0x78] sm:$0xff]
        %s781 = scalar_lea.vmem [#allocation7], 6
        %v782 = vld [vmem:[%s781] sm:$0x3]
        %v784 = vperm.slane %v782, 0
        %v785 = vperm.slane %v782, 1
        %v804 = vunpack.c.l.b16 %v765
        %v805 = vunpack.c.h.b16 %v765
        %v806 = vunpack.c.l.b16 %v766
        %v807 = vunpack.c.h.b16 %v766
        %v808 = vunpack.c.l.b16 %v767
        %v809 = vunpack.c.h.b16 %v767
        %v810 = vunpack.c.l.b16 %v768
        %v811 = vunpack.c.h.b16 %v768
        %v812 = vunpack.c.l.b16 %v769
        %v813 = vunpack.c.h.b16 %v769
        %v814 = vunpack.c.l.b16 %v770
        %v815 = vunpack.c.h.b16 %v770
        %v816 = vunpack.c.l.b16 %v771
        %v817 = vunpack.c.h.b16 %v771
        %v818 = vunpack.c.l.b16 %v772
        %v819 = vunpack.c.h.b16 %v772
        %v820 = vunpack.c.l.b16 %v773
        %v821 = vunpack.c.h.b16 %v773
        %v822 = vunpack.c.l.b16 %v774
        %v823 = vunpack.c.h.b16 %v774
        %v824 = vunpack.c.l.b16 %v775
        %v825 = vunpack.c.h.b16 %v775
        %v826 = vunpack.c.l.b16 %v776
        %v827 = vunpack.c.h.b16 %v776
        %v828 = vunpack.c.l.b16 %v777
        %v829 = vunpack.c.h.b16 %v777
        %v830 = vunpack.c.l.b16 %v778
        %v831 = vunpack.c.h.b16 %v778
        %v832 = vunpack.c.l.b16 %v779
        %v833 = vunpack.c.h.b16 %v779
        %v834 = vunpack.c.l.b16 %v780
        %v835 = vunpack.c.h.b16 %v780
        %v836 = vpack.c.b16 %v806, %v804
        %v837 = vpack.c.b16 %v807, %v805
        %v838 = vpack.c.b16 %v810, %v808
        %v839 = vpack.c.b16 %v811, %v809
        %v840 = vpack.c.b16 %v814, %v812
        %v841 = vpack.c.b16 %v815, %v813
        %v842 = vpack.c.b16 %v818, %v816
        %v843 = vpack.c.b16 %v819, %v817
        %v844 = vpack.c.b16 %v822, %v820
        %v845 = vpack.c.b16 %v823, %v821
        %v846 = vpack.c.b16 %v826, %v824
        %v847 = vpack.c.b16 %v827, %v825
        %v848 = vpack.c.b16 %v830, %v828
        %v849 = vpack.c.b16 %v831, %v829
        %v850 = vpack.c.b16 %v834, %v832
        %v851 = vpack.c.b16 %v835, %v833
        %868 = vmatpush.bf16.msra.mxu0 %v850
        %869 = vmatpush.bf16.msra.mxu0 %v848
        %870 = vmatpush.bf16.msra.mxu0 %v846
        %871 = vmatpush.bf16.msra.mxu0 %v844
        %872 = vmatpush.bf16.msra.mxu0 %v842
        %873 = vmatpush.bf16.msra.mxu0 %v840
        %874 = vmatpush.bf16.msra.mxu0 %v838
        %875 = vmatpush.bf16.msra.mxu0 %v836
        %876 = vmatmul.bf16.gmra.mxu0 %v763
        %v877 = vpop.f32.mrf.mxu0
        %v878 = vadd.f32 %v784, %v877
        %v879 = vpop.f32.mrf.mxu0
        %v880 = vadd.f32 %v784, %v879
        %881 = vdwg.mxu0
        %882 = vmatpush.bf16.msra.mxu0 %v851
        %883 = vmatpush.bf16.msra.mxu0 %v849
        %884 = vmatpush.bf16.msra.mxu0 %v847
        %885 = vmatpush.bf16.msra.mxu0 %v845
        %886 = vmatpush.bf16.msra.mxu0 %v843
        %887 = vmatpush.bf16.msra.mxu0 %v841
        %888 = vmatpush.bf16.msra.mxu0 %v839
        %889 = vmatpush.bf16.msra.mxu0 %v837
        %890 = vmatmul.bf16.gmra.mxu0 %v763
        %v891 = vpop.f32.mrf.mxu0
        %v892 = vadd.f32 %v785, %v891
        %v893 = vpop.f32.mrf.mxu0
        %v894 = vadd.f32 %v785, %v893
        %895 = vdwg.mxu0
        %v896 = vmax.f32 %v878, 0.0
        %v897 = vmax.f32 %v880, 0.0
        %v898 = vxor.u32 %v892, 2147483648
        %v899 = vxor.u32 %v894, 2147483648
        %v900 = vmul.f32 %v898, 1.442695
        %v901 = vpow.pop %v900
        %v902 = vmul.f32 %v899, 1.442695
        %v903 = vpow.pop %v902
        %v904 = vadd.f32 %v901, 1.0
        %v905 = vadd.f32 %v903, 1.0
        %v906 = vrcp.pop %v904
        %v907 = vmul.f32 %v904, %v906
        %v908 = vsub.f32 1.0, %v907
        %v909 = vmul.f32 %v906, %v908
        %v910 = vadd.f32 %v906, %v909
        %vm911 = vweird.f32 %v904
        %vm912 = vweird.f32 %v906
        %vm913 = vmor %vm911, %vm912
        %v914 = vsel %vm913, %v906, %v910
        %v915 = vand.u32 2147483647, %v904
        %vm916 = vcmp.eq.f32.partialorder %v915, 8.507059e+37
        %v917 = vand.u32 %v904, 2147483648
        %v918 = vor.u32 1.1754944e-38, %v917
        %v919 = vsel %vm916, %v918, %v914
        %v920 = vmul.f32 1.0, %v919
        %v921 = vrcp.pop %v905
        %v922 = vmul.f32 %v905, %v921
        %v923 = vsub.f32 1.0, %v922
        %v924 = vmul.f32 %v921, %v923
        %v925 = vadd.f32 %v921, %v924
        %vm926 = vweird.f32 %v905
        %vm927 = vweird.f32 %v921
        %vm928 = vmor %vm926, %vm927
        %v929 = vsel %vm928, %v921, %v925
        %v930 = vand.u32 2147483647, %v905
        %vm931 = vcmp.eq.f32.partialorder %v930, 8.507059e+37
        %v932 = vand.u32 %v905, 2147483648
        %v933 = vor.u32 1.1754944e-38, %v932
        %v934 = vsel %vm931, %v933, %v929
        %v935 = vmul.f32 1.0, %v934
        %v936 = vsub.f32 %v896, %v761
        %v937 = vsub.f32 %v897, %v762
        %v938 = vmul.f32 %v920, %v936
        %v939 = vmul.f32 %v935, %v937
        %v940 = vadd.f32 %v761, %v938
        %v941 = vadd.f32 %v762, %v939
        %942 = vst [vmem:[%s223] sm:$0xff] %v940
        %943 = vst [vmem:[%s223 + $0x8] sm:$0xff] %v941
        %s944 = sand.u32 %s97, 1
        %s945 = scalar_lea.sflag [#allocation4], %s944
        %s946 = sand.u32 %s97, 1
        %s947 = smul.addr %s946, 16
        %s948 = scalar_lea.vmem [#allocation8], %s947
        // Predicated region
        $region45: #{highwaynet_forward.1} parent=31 // pred_check
          %p949 = pneg %p107
        $region46: #{highwaynet_forward.1} parent=31 // pred_check_branch
          %951 = sbr.rel (%p949) target = $region48
        $region47: #{highwaynet_forward.1} parent=31 // pred_region
          %s952 = smul.u32 2, %s21
          %954 = vsyncadd %s945, 0
          %s955 = smul.addr %s952, 8
          %s956 = scalar_lea.hbm %s3, %s955
          %s957 = sshll.u32 %s948, 4
          %s958 = int_to_ptr.vmem [resolvable:$true] %s957
          %s959 = sshll.u32 %s956, 4
          %s960 = int_to_ptr.hbm [resolvable:$true] %s959
          %965 = dma.vmem_to_hbm [thread:$0]  %s958, 256, %s960, %s945, 128, 128, 8
        $region48: #{highwaynet_forward.1} parent=31 // pred_fallthru
          _
      $region32: #{highwaynet_forward.1} parent=5 // pred_fallthru
        _
      %p966 = scmp.le.s32.totalorder 2, %s16
      // Predicated region
      $region49: #{highwaynet_forward.1} parent=5 // pred_check
        %p967 = pneg %p966
      $region50: #{highwaynet_forward.1} parent=5 // pred_check_branch
        %969 = sbr.rel (%p967) target = $region52
      $region51: #{highwaynet_forward.1} parent=5 // pred_region
        %s970 = ssub.s32 %s16, 2
        // Predicated region
        $region53: #{highwaynet_forward.1} parent=51 // pred_check
          %p971 = pneg %p113
        $region54: #{highwaynet_forward.1} parent=51 // pred_check_branch
          %973 = sbr.rel (%p971) target = $region56
        $region55: #{highwaynet_forward.1} parent=51 // pred_region
          %s974 = sand.u32 %s98, 1
          %s975 = scalar_lea.sflag [#allocation4], %s974
          %s976 = sand.u32 %s98, 1
          %s977 = smul.addr %s976, 16
          %s978 = scalar_lea.vmem [#allocation8], %s977
          %980 = dma.done %s975, 256
        $region56: #{highwaynet_forward.1} parent=51 // pred_fallthru
          _
      $region52: #{highwaynet_forward.1} parent=5 // pred_fallthru
        _
    $region6: #{highwaynet_forward.1} parent=1 // loop_footer
      %s20 = sadd.s32 1, %s16
    $region7: #{highwaynet_forward.1} parent=1 // loop_footer_branch
      %15 = sbr.rel target = $region3
    $region8: #{highwaynet_forward.1} parent=1 // loop_exit
      _
    %981 = vsyncpa [#allocation3], 1
    %s982 = scalar_lea.sflag [#allocation3], 1
    %983 = vsyncpa %s982, 1
    %984 = vsyncpa [#allocation6], 1
    %985 = vsyncpa [#allocation4], 1
    %s986 = scalar_lea.sflag [#allocation4], 1
    %987 = vsyncpa %s986, 1

</llo_original>
